<compile_context>
chip_gen: v7x
topology: tpu7x:2x2x1
jax: 0.10.0
libtpu: 0.0.40
codegen_flags: <defaults>
</compile_context>

<pallas_src>
import math

import jax
import jax.numpy as jnp
from jax.experimental import pallas as pl
from jax.experimental.pallas import tpu as pltpu

EPS = 1e-9  # schnetpack.nn.base.Standardize eps


def _standardize_kernel(x_ref, params_ref, o_ref):
    # params_ref: (2, lane) float32 -- row 0 = mean, row 1 = 1/(stddev + eps),
    # tiled to the lane width; broadcast over the row (sublane) axis.
    x = x_ref[...].astype(jnp.float32)
    mean = params_ref[0:1, :]
    inv_std = params_ref[1:2, :]
    o_ref[...] = ((x - mean) * inv_std).astype(o_ref.dtype)


def _choose_fold(F, rows, max_lane=512):
    """Rows folded into the lane axis so the lane width is a multiple of 128
    (unmasked vst). Must divide `rows` exactly so no host-side padding or
    post-slice is ever needed; otherwise fall back to fold=1 (lane = F)."""
    if F % 128 == 0:
        return 1
    base = math.lcm(F, 128) // F
    if base * F <= max_lane and rows % base == 0:
        return base
    return 1


def standardize_sf_forward(representation, sf_mean, sf_stddev,
                           *, tile_bytes=2 << 20, min_steps=4):
    """Pallas implementation of StandardizeSF.forward applied to a precomputed
    representation tensor of shape (B, n_atoms, n_symfuncs)."""
    # TODO(synk): SFBlock (the injected symmetry-function descriptor module) is
    # not reproduced here; `representation` stands in for SFBlock(inputs).
    B, A, F = representation.shape
    dtype = representation.dtype
    itemsize = jnp.dtype(dtype).itemsize
    rows = B * A

    # Standardization parameters, kept in float32 (exact; tiny (F,) ops).
    mean = sf_mean.astype(jnp.float32)
    inv_std = 1.0 / (sf_stddev.astype(jnp.float32) + EPS)

    # Lane-dense folding (exact rearrangement, no padding).
    fold = _choose_fold(F, rows)
    lane = fold * F
    folded = rows // fold                       # exact by construction

    x2 = representation.reshape(folded, lane)   # contiguous reshape, no copy

    params = jnp.stack(
        [jnp.tile(mean, fold), jnp.tile(inv_std, fold)], axis=0
    )                                           # (2, lane) float32

    # Row-tile selection: dtype-aware sublane multiple, ~2 MiB tiles, and at
    # least `min_steps` grid steps once the array is non-trivial so the
    # pipeline overlaps DMA with compute (and shards across v7x's 2 TCs).
    sub = 8 * max(1, 4 // itemsize)             # 8 (f32), 16 (bf16), 32 (int8)
    total_bytes = folded * lane * itemsize
    if folded <= sub or total_bytes <= (1 << 20):
        row_tile = folded                       # tiny: single full-extent block
    else:
        t = max(sub, (tile_bytes // (lane * itemsize)) // sub * sub)
        cap = max(sub, (pl.cdiv(folded, min_steps) // sub) * sub)
        row_tile = min(t, cap)

    grid = (pl.cdiv(folded, row_tile),)         # ragged last block -> masked

    out = pl.pallas_call(
        _standardize_kernel,
        out_shape=jax.ShapeDtypeStruct((folded, lane), dtype),
        grid_spec=pl.GridSpec(
            grid=grid,
            in_specs=[
                pl.BlockSpec((row_tile, lane), lambda i: (i, 0)),
                pl.BlockSpec((2, lane), lambda i: (0, 0)),
            ],
            out_specs=pl.BlockSpec((row_tile, lane), lambda i: (i, 0)),
        ),
        compiler_params=pltpu.CompilerParams(
            dimension_semantics=("parallel",),
        ),
    )(x2, params)

    return out.reshape(B, A, F)


if __name__ == "__main__":
    key = jax.random.PRNGKey(0)
    k_rep, k_mean, k_std, k_big = jax.random.split(key, 4)

    # Small shapes consistent with a SchNetPack ACSF representation.
    B, n_atoms, n_symfuncs = 2, 8, 32

    # Stand-in for SFBlock(inputs): a deterministic representation tensor.
    representation = jax.random.normal(
        k_rep, (B, n_atoms, n_symfuncs), dtype=jnp.float32)

    # 1) Parameters exactly as in __init__ with data_loader=None.
    sf_mean = jnp.zeros((n_symfuncs,), dtype=jnp.float32)
    sf_stddev = jnp.ones((n_symfuncs,), dtype=jnp.float32)
    out = jax.block_until_ready(
        standardize_sf_forward(representation, sf_mean, sf_stddev))
    ref = (representation - sf_mean[None, None, :]) / (sf_stddev[None, None, :] + EPS)
    assert out.shape == (B, n_atoms, n_symfuncs)
    assert jnp.allclose(out, ref, atol=1e-6, rtol=1e-5)

    # 2) Non-trivial statistics (checks folded-lane layout + reciprocal path).
    sf_mean2 = jax.random.normal(k_mean, (n_symfuncs,), dtype=jnp.float32)
    sf_stddev2 = 0.5 + jax.random.uniform(k_std, (n_symfuncs,), dtype=jnp.float32)
    out2 = jax.block_until_ready(
        standardize_sf_forward(representation, sf_mean2, sf_stddev2))
    ref2 = (representation - sf_mean2[None, None, :]) / (sf_stddev2[None, None, :] + EPS)
    assert jnp.allclose(out2, ref2, atol=1e-6, rtol=1e-5)

    # 3) Medium shape exercising the multi-step pipelined grid (no pad/slice).
    Bb, Ab = 16, 1024
    rep_big = jax.random.normal(k_big, (Bb, Ab, n_symfuncs), dtype=jnp.float32)
    out3 = jax.block_until_ready(
        standardize_sf_forward(rep_big, sf_mean2, sf_stddev2))
    ref3 = (rep_big - sf_mean2[None, None, :]) / (sf_stddev2[None, None, :] + EPS)
    assert jnp.allclose(out3, ref3, atol=1e-6, rtol=1e-5)

    # 4) bf16 input with float32 parameters (cast only on the output store).
    rep_bf16 = representation.astype(jnp.bfloat16)
    out4 = jax.block_until_ready(
        standardize_sf_forward(rep_bf16, sf_mean2, sf_stddev2))
    ref4 = ((rep_bf16.astype(jnp.float32) - sf_mean2[None, None, :])
            / (sf_stddev2[None, None, :] + EPS)).astype(jnp.bfloat16)
    assert out4.dtype == jnp.bfloat16
    assert jnp.allclose(out4.astype(jnp.float32), ref4.astype(jnp.float32),
                        atol=1e-2, rtol=1e-2)

    print("KERNEL_OK")
</pallas_src>

<mosaic_0001>
module attributes {stable_mosaic.version = 11 : i64} {
  func.func @_standardize_kernel(%arg0: i32, %arg1: memref<4x128xf32, #tpu.memory_space<vmem>>, %arg2: memref<2x128xf32, #tpu.memory_space<vmem>>, %arg3: memref<4x128xf32, #tpu.memory_space<vmem>>) attributes {dimension_semantics = [#tpu.dimension_semantics<parallel>], iteration_bounds = array<i64: 1>, scalar_prefetch = 0 : i64, scratch_operands = 0 : i64, tpu.core_type = #tpu.core_type<tc>, window_params = [{transform_indices = @transform_0, window_bounds = array<i64: 4, 128>}, {pipeline_mode = #tpu.pipeline_mode<synchronous>, transform_indices = @transform_1, window_bounds = array<i64: 2, 128>}, {transform_indices = @transform_2, window_bounds = array<i64: 4, 128>}]} {
    %c0 = arith.constant 0 : index
    %c0_0 = arith.constant 0 : index
    %0 = vector.load %arg1[%c0, %c0_0] : memref<4x128xf32, #tpu.memory_space<vmem>>, vector<4x128xf32>
    %c0_1 = arith.constant 0 : index
    %c0_2 = arith.constant 0 : index
    %1 = vector.load %arg2[%c0_1, %c0_2] : memref<2x128xf32, #tpu.memory_space<vmem>>, vector<1x128xf32>
    %c1 = arith.constant 1 : index
    %c0_3 = arith.constant 0 : index
    %2 = vector.load %arg2[%c1, %c0_3] : memref<2x128xf32, #tpu.memory_space<vmem>>, vector<1x128xf32>
    %3 = vector.broadcast %1 : vector<1x128xf32> to vector<4x128xf32>
    %4 = arith.subf %0, %3 : vector<4x128xf32>
    %5 = vector.broadcast %2 : vector<1x128xf32> to vector<4x128xf32>
    %6 = arith.mulf %4, %5 : vector<4x128xf32>
    %c0_4 = arith.constant 0 : index
    %c0_5 = arith.constant 0 : index
    %7 = vector.load %arg3[%c0_4, %c0_5] : memref<4x128xf32, #tpu.memory_space<vmem>>, vector<4x128xf32>
    tpu.vector_store %arg3[%c0_4, %c0_5], %6 {strides = array<i32>} : memref<4x128xf32, #tpu.memory_space<vmem>>, vector<4x128xf32>,
    return
  }
  func.func @transform_0(%arg0: i32) -> (i32, i32) {
    %c0_i32 = arith.constant 0 : i32
    %c0_i32_0 = arith.constant 0 : i32
    return %arg0, %c0_i32 : i32, i32
  }
  func.func @transform_1(%arg0: i32) -> (i32, i32) {
    %c0_i32 = arith.constant 0 : i32
    %c0_i32_0 = arith.constant 0 : i32
    %c0_i32_1 = arith.constant 0 : i32
    return %c0_i32, %c0_i32_0 : i32, i32
  }
  func.func @transform_2(%arg0: i32) -> (i32, i32) {
    %c0_i32 = arith.constant 0 : i32
    %c0_i32_0 = arith.constant 0 : i32
    return %arg0, %c0_i32 : i32, i32
  }
}

</mosaic_0001>

<llo_original>
// kernel: tpu_custom_call.1
$region0: #{tpu_custom_call.1}
  #allocation0 [shape = 'u32[]', space=smem, size = 0x4, offset = 0x4, fixed_abs, tag = 'smem constant byte address 0x4 - core index']
  #allocation1 [shape = 'u32[144,128]{1,0:T(1,128)}', space=vmem, size = 0x12000, scoped, tag = 'internal scratch']
  %s0 = inlined_call_operand.hbm [shape: f32[4,128], index: 0, kind: input, shape index: {}]
  %s1 = inlined_call_operand.vmem [shape: f32[2,128], index: 1, kind: input, shape index: {}]
  %s2 = inlined_call_operand.hbm [shape: f32[4,128], index: 2, kind: output, shape index: {}]
  %s3 = sld [smem:[#allocation0]]
  $region22: #{tpu_custom_call.1} parent=0
    _
  %s5 = ssub.s32 1, %s3
  %s6 = scalar_select 0, %s5, %s3
  $region1: #{tpu_custom_call.1} parent=0
    #allocation2 [shape = 'u8[2048]{0}', space=vmem, size = 0x800, scoped, tag = 'input window, operand 0, single buffered']
    #allocation3 [shape = 's32[1]{0}', space=sflag, size = 0x4, scoped, tag = 'scoped memory for tpu_custom_call.1']
    #allocation4 [shape = 's32[1]{0}', space=sflag, size = 0x4, scoped, tag = 'scoped memory for tpu_custom_call.1']
    #allocation5 [shape = 'u8[2048]{0}', space=vmem, size = 0x800, scoped, tag = 'output window, operand 0, single buffered']
    %7 = vsyncpa [#allocation3], 0
    %8 = vsyncpa [#allocation4], 0
    // Predicated region
    $region2: #{tpu_custom_call.1} parent=1 // pred_check
      _
    $region3: #{tpu_custom_call.1} parent=1 // pred_check_branch
      %10 = sbr.rel (0) target = $region5
    $region4: #{tpu_custom_call.1} parent=1 // pred_region
      %s12 = ssub.s32 64, 64
      %13 = vsyncadd [#allocation3], %s12
      %s15 = sshll.u32 [#allocation2], 4
      %s16 = int_to_ptr.vmem [resolvable:$true] %s15
      %18 = dma.hbm_to_vmem [thread:$0]  %s0, 64, %s16, [#allocation3]
    $region5: #{tpu_custom_call.1} parent=1 // pred_fallthru
      _
    // Predicated region
    $region6: #{tpu_custom_call.1} parent=1 // pred_check
      _
    $region7: #{tpu_custom_call.1} parent=1 // pred_check_branch
      %20 = sbr.rel (0) target = $region9
    $region8: #{tpu_custom_call.1} parent=1 // pred_region
      _
    $region9: #{tpu_custom_call.1} parent=1 // pred_fallthru
      _
    // Predicated region
    $region10: #{tpu_custom_call.1} parent=1 // pred_check
      _
    $region11: #{tpu_custom_call.1} parent=1 // pred_check_branch
      %22 = sbr.rel (0) target = $region13
    $region12: #{tpu_custom_call.1} parent=1 // pred_region
      %23 = dma.done [#allocation3], 64
    $region13: #{tpu_custom_call.1} parent=1 // pred_fallthru
      _
    %v24 = vld [vmem:[#allocation2] sm:$0xf]
    %v25 = vld [vmem:[%s1] sm:$0x1]
    %v26 = vld [vmem:[%s1 + $0x1] sm:$0x1]
    %v27 = vlaneseq
    %v28 = vshrl.u32 %v27, 7
    %v29 = vsub.s32 0, %v28
    %v30 = vrot.slane %v25, %v29
    %v31 = vsub.f32 %v24, %v30
    %v32 = vlaneseq
    %v33 = vshrl.u32 %v32, 7
    %v34 = vsub.s32 0, %v33
    %v35 = vrot.slane %v26, %v34
    %v36 = vmul.f32 %v31, %v35
    %37 = vst [vmem:[#allocation5] sm:$0xf] %v36
    // Predicated region
    $region14: #{tpu_custom_call.1} parent=1 // pred_check
      _
    $region15: #{tpu_custom_call.1} parent=1 // pred_check_branch
      %39 = sbr.rel (0) target = $region17
    $region16: #{tpu_custom_call.1} parent=1 // pred_region
      %s41 = ssub.s32 64, 64
      %42 = vsyncadd [#allocation4], %s41
      %s44 = sshll.u32 [#allocation5], 4
      %s45 = int_to_ptr.vmem [resolvable:$true] %s44
      %47 = dma.vmem_to_hbm [thread:$0]  %s45, 64, %s2, [#allocation4]
    $region17: #{tpu_custom_call.1} parent=1 // pred_fallthru
      _
    // Predicated region
    $region18: #{tpu_custom_call.1} parent=1 // pred_check
      _
    $region19: #{tpu_custom_call.1} parent=1 // pred_check_branch
      %49 = sbr.rel (0) target = $region21
    $region20: #{tpu_custom_call.1} parent=1 // pred_region
      %50 = dma.done [#allocation4], 64
    $region21: #{tpu_custom_call.1} parent=1 // pred_fallthru
      _
    %51 = vsyncpa [#allocation3], 1
    %52 = vsyncpa [#allocation4], 1

</llo_original>
